<compile_context>
chip_gen: v7x
topology: tpu7x:2x2x1
jax: 0.10.0
libtpu: 0.0.40
codegen_flags: <defaults>
</compile_context>

<pallas_src>
import math

import jax
import jax.numpy as jnp
from jax.experimental import pallas as pl
from jax.experimental.pallas import tpu as pltpu

_LANE = 128
_MAX_LANE = 8192
_MIB = 1024 * 1024


def _identity_kernel(x_ref, o_ref):
    # Whole-tile load + store: lane-dense vld/vst, no compute.
    o_ref[...] = x_ref[...]


def _sublane_min(dtype) -> int:
    # Sub-32-bit dtypes pack along sublanes: f32 -> 8, bf16 -> 16, int8/fp8 -> 32.
    itemsize = jnp.dtype(dtype).itemsize
    return 8 * max(1, 4 // max(itemsize, 1))


def _vmem_budget():
    """(per-buffer tile budget, scoped-VMEM limit), chosen per TPU generation."""
    vmem = None
    try:
        vmem = getattr(pltpu.get_tpu_info(), "vmem_capacity_bytes", None)
    except Exception:  # query unavailable (e.g. interpret mode)
        vmem = None
    if vmem is None:
        return 4 * _MIB, 32 * _MIB          # safe on every generation
    if vmem >= 96 * _MIB:
        return 16 * _MIB, 96 * _MIB         # v5e / v6e: 128 MiB physical VMEM
    return 4 * _MIB, 48 * _MIB              # v7x-class: 64 MiB per TensorCore


def _identity_call(x2d, *, grid=None, block_shape=None, index_map=None,
                   vmem_limit=32 * _MIB):
    """pallas_call wrapper: output aliases the input buffer (copy elided when donated)."""
    if grid is None:
        return pl.pallas_call(
            _identity_kernel,
            out_shape=jax.ShapeDtypeStruct(x2d.shape, x2d.dtype),
            input_output_aliases={0: 0},
            compiler_params=pltpu.CompilerParams(vmem_limit_bytes=vmem_limit),
        )(x2d)
    return pl.pallas_call(
        _identity_kernel,
        out_shape=jax.ShapeDtypeStruct(x2d.shape, x2d.dtype),
        grid_spec=pltpu.PrefetchScalarGridSpec(
            num_scalar_prefetch=0,
            grid=grid,
            in_specs=[pl.BlockSpec(block_shape, index_map)],
            out_specs=pl.BlockSpec(block_shape, index_map),
        ),
        input_output_aliases={0: 0},
        compiler_params=pltpu.CompilerParams(
            # "parallel" lets v7x's two TensorCores split the stripes;
            # neutral on single-TC v5e/v6e.
            dimension_semantics=("parallel",),
            vmem_limit_bytes=vmem_limit,
        ),
    )(x2d)


def base_feature_extractor_forward(x_nchw: jax.Array) -> jax.Array:
    """Identity 'forward' of the abstract BaseFeatureExtractor via Pallas."""
    shape = x_nchw.shape
    dtype = x_nchw.dtype
    itemsize = jnp.dtype(dtype).itemsize
    total = math.prod(shape) if shape else 1

    if total == 0:
        return x_nchw  # nothing to move

    tile_budget, vmem_limit = _vmem_budget()
    total_bytes = total * itemsize

    # ---- lane-dense 2-D view: (rows, lane), lane a multiple of 128 that
    #      divides the element count exactly (no padding DMA'd). ----
    lane = 0
    if total % _LANE == 0:
        lane = _LANE
        while lane * 2 <= _MAX_LANE and total % (lane * 2) == 0:
            lane *= 2

    if lane:
        rows = total // lane
        x2d = x_nchw.reshape(rows, lane)

        if total_bytes <= tile_budget:
            # One full-array block: single grid step, single round trip.
            out2d = _identity_call(x2d, vmem_limit=vmem_limit)
            return out2d.reshape(shape)

        # Tiled: 1-D grid over sublane rows, largest stripe within budget.
        sub = _sublane_min(dtype)
        rows_per_budget = max(sub, tile_budget // (lane * itemsize))
        block_rows = max(sub, (rows_per_budget // sub) * sub)
        # Keep >= 4 stripes so both v7x TensorCores get balanced work.
        quarter = (rows // 4 // sub) * sub
        if quarter >= sub:
            block_rows = min(block_rows, quarter)
        block_rows = min(block_rows, ((rows + sub - 1) // sub) * sub)

        out2d = _identity_call(
            x2d,
            grid=(pl.cdiv(rows, block_rows),),
            block_shape=(block_rows, lane),
            index_map=lambda i: (i, 0),
            vmem_limit=vmem_limit,
        )
        return out2d.reshape(shape)

    # ---- fallback: element count not divisible by 128.  View as (1, total)
    #      and tile along lanes in 128-multiple chunks (ragged tail masked).
    #      A (1, N) view fills only 1 of 8 sublanes per VMEM tile, so budget
    #      against 8x the raw bytes. ----
    x2d = x_nchw.reshape(1, total)
    if 8 * total_bytes <= tile_budget:
        out2d = _identity_call(x2d, vmem_limit=vmem_limit)
        return out2d.reshape(shape)

    cols_per_budget = max(_LANE, tile_budget // (8 * itemsize))
    block_cols = max(_LANE, (cols_per_budget // _LANE) * _LANE)
    quarter = (total // 4 // _LANE) * _LANE
    if quarter >= _LANE:
        block_cols = min(block_cols, quarter)
    block_cols = min(block_cols, ((total + _LANE - 1) // _LANE) * _LANE)

    out2d = _identity_call(
        x2d,
        grid=(pl.cdiv(total, block_cols),),
        block_shape=(1, block_cols),
        index_map=lambda i: (0, i),
        vmem_limit=vmem_limit,
    )
    return out2d.reshape(shape)


if __name__ == "__main__":
    import numpy as np

    key = jax.random.PRNGKey(0)
    k1, k2 = jax.random.split(key)

    # Small NCHW input consistent with a 2-D feature extractor.
    x = jax.random.normal(k1, (2, 4, 16, 16), dtype=jnp.float32)
    x_host = np.asarray(x, dtype=np.float32)
    y = base_feature_extractor_forward(x)
    jax.block_until_ready(y)
    assert y.shape == (2, 4, 16, 16) and y.dtype == jnp.float32
    assert np.allclose(np.asarray(y, dtype=np.float32), x_host)

    # Robustness check: element count not divisible by 128 (fallback path).
    x_odd = jax.random.normal(k2, (2, 3, 5, 7), dtype=jnp.bfloat16)
    x_odd_host = np.asarray(x_odd, dtype=np.float32)
    y_odd = base_feature_extractor_forward(x_odd)
    jax.block_until_ready(y_odd)
    assert y_odd.shape == (2, 3, 5, 7) and y_odd.dtype == jnp.bfloat16
    assert np.array_equal(np.asarray(y_odd, dtype=np.float32), x_odd_host)

    print("KERNEL_OK")
</pallas_src>

<mosaic_0001>
module attributes {stable_mosaic.version = 11 : i64} {
  func.func @_identity_kernel(%arg0: memref<1x2048xf32, #tpu.memory_space<vmem>>, %arg1: memref<1x2048xf32, #tpu.memory_space<vmem>>) attributes {dimension_semantics = [], scalar_prefetch = 0 : i64, scratch_operands = 0 : i64, tpu.core_type = #tpu.core_type<tc>} {
    %c0 = arith.constant 0 : index
    %c0_0 = arith.constant 0 : index
    %0 = vector.load %arg0[%c0, %c0_0] : memref<1x2048xf32, #tpu.memory_space<vmem>>, vector<1x2048xf32>
    %c0_1 = arith.constant 0 : index
    %c0_2 = arith.constant 0 : index
    %1 = vector.load %arg1[%c0_1, %c0_2] : memref<1x2048xf32, #tpu.memory_space<vmem>>, vector<1x2048xf32>
    tpu.vector_store %arg1[%c0_1, %c0_2], %0 {strides = array<i32>} : memref<1x2048xf32, #tpu.memory_space<vmem>>, vector<1x2048xf32>,
    return
  }
}

</mosaic_0001>

<llo_original>
// kernel: tpu_custom_call.1
$region0: #{tpu_custom_call.1}
  #allocation0 [shape = 'u32[]', space=smem, size = 0x4, offset = 0x4, fixed_abs, tag = 'smem constant byte address 0x4 - core index']
  #allocation1 [shape = 'u32[144,128]{1,0:T(1,128)}', space=vmem, size = 0x12000, scoped, tag = 'internal scratch']
  %s0 = inlined_call_operand.hbm [shape: f32[1,2048], index: 0, kind: input, shape index: {}, may-alias: {0,1}]
  %s1 = inlined_call_operand.hbm [shape: f32[1,2048], index: 1, kind: output, shape index: {}, may-alias: {0,1}]
  %s2 = sld [smem:[#allocation0]]
  $region18: #{tpu_custom_call.1} parent=0
    _
  %s4 = ssub.s32 1, %s2
  %s5 = scalar_select 0, %s4, %s2
  $region1: #{tpu_custom_call.1} parent=0
    #allocation2 [shape = 'u8[8192]{0}', space=vmem, size = 0x2000, scoped, tag = 'input window, operand 0, single buffered']
    #allocation3 [shape = 's32[1]{0}', space=sflag, size = 0x4, scoped, tag = 'scoped memory for tpu_custom_call.1']
    #allocation4 [shape = 's32[1]{0}', space=sflag, size = 0x4, scoped, tag = 'scoped memory for tpu_custom_call.1']
    #allocation5 [shape = 'u8[8192]{0}', space=vmem, size = 0x2000, scoped, tag = 'output window, operand 0, single buffered']
    %6 = vsyncpa [#allocation3], 0
    %7 = vsyncpa [#allocation4], 0
    // Predicated region
    $region2: #{tpu_custom_call.1} parent=1 // pred_check
      _
    $region3: #{tpu_custom_call.1} parent=1 // pred_check_branch
      %9 = sbr.rel (0) target = $region5
    $region4: #{tpu_custom_call.1} parent=1 // pred_region
      %s11 = ssub.s32 256, 256
      %12 = vsyncadd [#allocation3], %s11
      %s14 = sshll.u32 [#allocation2], 4
      %s15 = int_to_ptr.vmem [resolvable:$true] %s14
      %17 = dma.hbm_to_vmem [thread:$0]  %s0, 256, %s15, [#allocation3]
    $region5: #{tpu_custom_call.1} parent=1 // pred_fallthru
      _
    // Predicated region
    $region6: #{tpu_custom_call.1} parent=1 // pred_check
      _
    $region7: #{tpu_custom_call.1} parent=1 // pred_check_branch
      %19 = sbr.rel (0) target = $region9
    $region8: #{tpu_custom_call.1} parent=1 // pred_region
      %20 = dma.done [#allocation3], 256
    $region9: #{tpu_custom_call.1} parent=1 // pred_fallthru
      _
    %v21 = vld [vmem:[#allocation2] sm:$0xff]
    %v22 = vld [vmem:[#allocation2 + $0x8] sm:$0xff]
    %23 = vst [vmem:[#allocation5] sm:$0xff] %v21
    %24 = vst [vmem:[#allocation5 + $0x8] sm:$0xff] %v22
    // Predicated region
    $region10: #{tpu_custom_call.1} parent=1 // pred_check
      _
    $region11: #{tpu_custom_call.1} parent=1 // pred_check_branch
      %26 = sbr.rel (0) target = $region13
    $region12: #{tpu_custom_call.1} parent=1 // pred_region
      %s28 = ssub.s32 256, 256
      %29 = vsyncadd [#allocation4], %s28
      %s31 = sshll.u32 [#allocation5], 4
      %s32 = int_to_ptr.vmem [resolvable:$true] %s31
      %34 = dma.vmem_to_hbm [thread:$0]  %s32, 256, %s1, [#allocation4]
    $region13: #{tpu_custom_call.1} parent=1 // pred_fallthru
      _
    // Predicated region
    $region14: #{tpu_custom_call.1} parent=1 // pred_check
      _
    $region15: #{tpu_custom_call.1} parent=1 // pred_check_branch
      %36 = sbr.rel (0) target = $region17
    $region16: #{tpu_custom_call.1} parent=1 // pred_region
      %37 = dma.done [#allocation4], 256
    $region17: #{tpu_custom_call.1} parent=1 // pred_fallthru
      _
    %38 = vsyncpa [#allocation3], 1
    %39 = vsyncpa [#allocation4], 1

</llo_original>
